<compile_context>
chip_gen: v6e
topology: v6e:2x2x1
jax: 0.10.0
libtpu: 0.0.40
codegen_flags: <defaults>
</compile_context>

<pallas_src>
import math

import jax
import jax.numpy as jnp
from jax import lax
from jax.experimental import pallas as pl
from jax.experimental.pallas import tpu as pltpu

# Contract dim 1 of the activation with dim 1 of a PyTorch-layout [out, in] weight:
# y[b, o] = sum_k x[b, k] * W[o, k]  ==  x @ W.T, with no transpose materialized.
_DOT_XT_W = (((1,), (1,)), ((), ()))


def _ae_kernel(x_ref, we_ref, be_ref, wd_ref, bd_ref, z_ref, xr_ref):
    x = x_ref[...]

    # Encoder: z = x @ We.T + be   (f32 accumulation on the MXU)
    z_acc = lax.dot_general(
        x, we_ref[...], dimension_numbers=_DOT_XT_W,
        preferred_element_type=jnp.float32,
    ) + be_ref[...]
    z_out = z_acc.astype(z_ref.dtype)
    z_ref[...] = z_out

    # Decoder consumes z at its stored precision (bit-parity with chained nn.Linear).
    xr_acc = lax.dot_general(
        z_out, wd_ref[...], dimension_numbers=_DOT_XT_W,
        preferred_element_type=jnp.float32,
    ) + bd_ref[...]
    xr_ref[...] = xr_acc.astype(xr_ref.dtype)


def _choose_batch_tile(B, input_dim, latent_dim, itemsize,
                       max_batch_tile=512, vmem_budget_bytes=28 * 1024 * 1024):
    """Largest 8-aligned batch tile (<= max) whose pipelined working set fits the budget."""
    b_ceil8 = max(8, -(-B // 8) * 8)
    tb = min(max_batch_tile, b_ceil8)

    def working_set(t):
        io = 2 * t * (2 * input_dim + latent_dim) * itemsize          # double-buffered x/z/xr
        wt = 2 * (2 * latent_dim * input_dim + latent_dim + input_dim) * itemsize  # weights/biases
        return io + wt

    while tb > 8 and working_set(tb) > vmem_budget_bytes:
        tb = max(8, (tb // 2) // 8 * 8)
    return tb


def linear_autoencoder_forward(x, we, be, wd, bd, *, max_batch_tile=512):
    """x: [B, input_dim]; we: [latent, input]; be: [latent]; wd: [input, latent]; bd: [input]."""
    B, input_dim = x.shape
    latent_dim = we.shape[0]
    itemsize = jnp.dtype(x.dtype).itemsize

    tb = _choose_batch_tile(B, input_dim, latent_dim, itemsize, max_batch_tile)

    # Pad the batch so the grid divides evenly; padded rows are dropped afterwards.
    Bp = -(-B // tb) * tb
    x_in = jnp.pad(x, ((0, Bp - B), (0, 0))) if Bp != B else x

    # Biases as [1, dim] for clean lane layout; loaded once, broadcast on the VPU.
    be2 = be.reshape(1, latent_dim)
    bd2 = bd.reshape(1, input_dim)

    grid = (Bp // tb,)

    flops = 4 * Bp * input_dim * latent_dim  # two matmuls, 2*M*N*K each
    bytes_accessed = itemsize * (
        Bp * input_dim                                   # read x
        + 2 * latent_dim * input_dim                     # read We, Wd
        + latent_dim + input_dim                         # read be, bd
        + Bp * latent_dim                                # write z
        + Bp * input_dim                                 # write x_recon
    )

    z, x_recon = pl.pallas_call(
        _ae_kernel,
        out_shape=(
            jax.ShapeDtypeStruct((Bp, latent_dim), x.dtype),
            jax.ShapeDtypeStruct((Bp, input_dim), x.dtype),
        ),
        grid=grid,
        in_specs=[
            pl.BlockSpec((tb, input_dim), lambda i: (i, 0)),          # x: batch-tiled
            pl.BlockSpec((latent_dim, input_dim), lambda i: (0, 0)),  # We: resident
            pl.BlockSpec((1, latent_dim), lambda i: (0, 0)),          # be: resident
            pl.BlockSpec((input_dim, latent_dim), lambda i: (0, 0)),  # Wd: resident
            pl.BlockSpec((1, input_dim), lambda i: (0, 0)),           # bd: resident
        ],
        out_specs=(
            pl.BlockSpec((tb, latent_dim), lambda i: (i, 0)),         # z
            pl.BlockSpec((tb, input_dim), lambda i: (i, 0)),          # x_recon
        ),
        compiler_params=pltpu.CompilerParams(
            dimension_semantics=("parallel",),          # megacore-shard the batch axis (v7x)
            vmem_limit_bytes=64 * 1024 * 1024,
        ),
        cost_estimate=pl.CostEstimate(
            flops=flops, transcendentals=0, bytes_accessed=bytes_accessed),
    )(x_in, we, be2, wd, bd2)

    if Bp != B:
        z = z[:B]
        x_recon = x_recon[:B]

    # Mirror the PyTorch module's return signature (weight/bias lists are glue, not compute).
    return z, x_recon, [we], [be], [wd], [bd]


def init_params(key, input_dim, latent_dim, dtype=jnp.float32):
    """Deterministic init mimicking nn.Linear default (uniform +/- 1/sqrt(fan_in))."""
    k1, k2, k3, k4 = jax.random.split(key, 4)
    be_bound = 1.0 / math.sqrt(input_dim)   # encoder fan_in = input_dim
    bd_bound = 1.0 / math.sqrt(latent_dim)  # decoder fan_in = latent_dim
    we = jax.random.uniform(k1, (latent_dim, input_dim), dtype, -be_bound, be_bound)
    be = jax.random.uniform(k2, (latent_dim,), dtype, -be_bound, be_bound)
    wd = jax.random.uniform(k3, (input_dim, latent_dim), dtype, -bd_bound, bd_bound)
    bd = jax.random.uniform(k4, (input_dim,), dtype, -bd_bound, bd_bound)
    return we, be, wd, bd


if __name__ == "__main__":
    key = jax.random.PRNGKey(0)
    kx, kp = jax.random.split(key)

    batch, input_dim, latent_dim = 16, 32, 8
    x = jax.random.normal(kx, (batch, input_dim), jnp.float32)
    we, be, wd, bd = init_params(kp, input_dim, latent_dim)

    z, x_recon, enc_w, enc_b, dec_w, dec_b = linear_autoencoder_forward(x, we, be, wd, bd)
    jax.block_until_ready((z, x_recon))

    # Pure-JAX reference check of the hot path.
    z_ref = x @ we.T + be
    xr_ref = z_ref @ wd.T + bd
    assert z.shape == (batch, latent_dim) and x_recon.shape == (batch, input_dim)
    assert jnp.allclose(z, z_ref, atol=1e-5), "encoder mismatch"
    assert jnp.allclose(x_recon, xr_ref, atol=1e-5), "decoder mismatch"

    print("KERNEL_OK")
</pallas_src>

<mosaic_0001>
module attributes {stable_mosaic.version = 11 : i64} {
  func.func @_ae_kernel(%arg0: i32, %arg1: memref<16x32xf32, #tpu.memory_space<vmem>>, %arg2: memref<8x32xf32, #tpu.memory_space<vmem>>, %arg3: memref<1x8xf32, #tpu.memory_space<vmem>>, %arg4: memref<32x8xf32, #tpu.memory_space<vmem>>, %arg5: memref<1x32xf32, #tpu.memory_space<vmem>>, %arg6: memref<16x8xf32, #tpu.memory_space<vmem>>, %arg7: memref<16x32xf32, #tpu.memory_space<vmem>>) attributes {dimension_semantics = [#tpu.dimension_semantics<parallel>], iteration_bounds = array<i64: 1>, scalar_prefetch = 0 : i64, scratch_operands = 0 : i64, tpu.core_type = #tpu.core_type<tc>, window_params = [{transform_indices = @transform_0, window_bounds = array<i64: 16, 32>}, {pipeline_mode = #tpu.pipeline_mode<synchronous>, transform_indices = @transform_1, window_bounds = array<i64: 8, 32>}, {pipeline_mode = #tpu.pipeline_mode<synchronous>, transform_indices = @transform_2, window_bounds = array<i64: 1, 8>}, {pipeline_mode = #tpu.pipeline_mode<synchronous>, transform_indices = @transform_3, window_bounds = array<i64: 32, 8>}, {pipeline_mode = #tpu.pipeline_mode<synchronous>, transform_indices = @transform_4, window_bounds = array<i64: 1, 32>}, {transform_indices = @transform_5, window_bounds = array<i64: 16, 8>}, {transform_indices = @transform_6, window_bounds = array<i64: 16, 32>}]} {
    %c0 = arith.constant 0 : index
    %c0_0 = arith.constant 0 : index
    %0 = vector.load %arg1[%c0, %c0_0] : memref<16x32xf32, #tpu.memory_space<vmem>>, vector<16x32xf32>
    %c0_1 = arith.constant 0 : index
    %c0_2 = arith.constant 0 : index
    %1 = vector.load %arg2[%c0_1, %c0_2] : memref<8x32xf32, #tpu.memory_space<vmem>>, vector<8x32xf32>
    %cst = arith.constant dense<0.000000e+00> : vector<16x8xf32>
    %2 = tpu.matmul %0, %1, %cst {dimension_numbers = #tpu.dot_dimension_numbers<[1], [1], [0], [0], [0, 0, 1, 0], [], []>} : vector<16x32xf32>, vector<8x32xf32>, vector<16x8xf32> -> vector<16x8xf32>
    %c0_3 = arith.constant 0 : index
    %c0_4 = arith.constant 0 : index
    %3 = vector.load %arg3[%c0_3, %c0_4] : memref<1x8xf32, #tpu.memory_space<vmem>>, vector<1x8xf32>
    %4 = vector.broadcast %3 : vector<1x8xf32> to vector<16x8xf32>
    %5 = arith.addf %2, %4 : vector<16x8xf32>
    %c0_5 = arith.constant 0 : index
    %c0_6 = arith.constant 0 : index
    %6 = vector.load %arg6[%c0_5, %c0_6] : memref<16x8xf32, #tpu.memory_space<vmem>>, vector<16x8xf32>
    tpu.vector_store %arg6[%c0_5, %c0_6], %5 {strides = array<i32>} : memref<16x8xf32, #tpu.memory_space<vmem>>, vector<16x8xf32>,
    %c0_7 = arith.constant 0 : index
    %c0_8 = arith.constant 0 : index
    %7 = vector.load %arg4[%c0_7, %c0_8] : memref<32x8xf32, #tpu.memory_space<vmem>>, vector<32x8xf32>
    %cst_9 = arith.constant dense<0.000000e+00> : vector<16x32xf32>
    %8 = tpu.matmul %5, %7, %cst_9 {dimension_numbers = #tpu.dot_dimension_numbers<[1], [1], [0], [0], [0, 0, 1, 0], [], []>} : vector<16x8xf32>, vector<32x8xf32>, vector<16x32xf32> -> vector<16x32xf32>
    %c0_10 = arith.constant 0 : index
    %c0_11 = arith.constant 0 : index
    %9 = vector.load %arg5[%c0_10, %c0_11] : memref<1x32xf32, #tpu.memory_space<vmem>>, vector<1x32xf32>
    %10 = vector.broadcast %9 : vector<1x32xf32> to vector<16x32xf32>
    %11 = arith.addf %8, %10 : vector<16x32xf32>
    %c0_12 = arith.constant 0 : index
    %c0_13 = arith.constant 0 : index
    %12 = vector.load %arg7[%c0_12, %c0_13] : memref<16x32xf32, #tpu.memory_space<vmem>>, vector<16x32xf32>
    tpu.vector_store %arg7[%c0_12, %c0_13], %11 {strides = array<i32>} : memref<16x32xf32, #tpu.memory_space<vmem>>, vector<16x32xf32>,
    return
  }
  func.func @transform_0(%arg0: i32) -> (i32, i32) {
    %c0_i32 = arith.constant 0 : i32
    %c0_i32_0 = arith.constant 0 : i32
    return %arg0, %c0_i32 : i32, i32
  }
  func.func @transform_1(%arg0: i32) -> (i32, i32) {
    %c0_i32 = arith.constant 0 : i32
    %c0_i32_0 = arith.constant 0 : i32
    %c0_i32_1 = arith.constant 0 : i32
    return %c0_i32, %c0_i32_0 : i32, i32
  }
  func.func @transform_2(%arg0: i32) -> (i32, i32) {
    %c0_i32 = arith.constant 0 : i32
    %c0_i32_0 = arith.constant 0 : i32
    %c0_i32_1 = arith.constant 0 : i32
    return %c0_i32, %c0_i32_0 : i32, i32
  }
  func.func @transform_3(%arg0: i32) -> (i32, i32) {
    %c0_i32 = arith.constant 0 : i32
    %c0_i32_0 = arith.constant 0 : i32
    %c0_i32_1 = arith.constant 0 : i32
    return %c0_i32, %c0_i32_0 : i32, i32
  }
  func.func @transform_4(%arg0: i32) -> (i32, i32) {
    %c0_i32 = arith.constant 0 : i32
    %c0_i32_0 = arith.constant 0 : i32
    %c0_i32_1 = arith.constant 0 : i32
    return %c0_i32, %c0_i32_0 : i32, i32
  }
  func.func @transform_5(%arg0: i32) -> (i32, i32) {
    %c0_i32 = arith.constant 0 : i32
    %c0_i32_0 = arith.constant 0 : i32
    return %arg0, %c0_i32 : i32, i32
  }
  func.func @transform_6(%arg0: i32) -> (i32, i32) {
    %c0_i32 = arith.constant 0 : i32
    %c0_i32_0 = arith.constant 0 : i32
    return %arg0, %c0_i32 : i32, i32
  }
}

</mosaic_0001>

<llo_original>
// kernel: tpu_custom_call.1
$region0: #{tpu_custom_call.1}
  #allocation0 [shape = 'u32[]', space=smem, size = 0x4, offset = 0x4, fixed_abs, tag = 'smem constant byte address 0x4 - core index']
  #allocation1 [shape = 'u32[144,128]{1,0:T(1,128)}', space=vmem, size = 0x12000, scoped, tag = 'internal scratch']
  %s0 = inlined_call_operand.vmem [shape: f32[16,32], index: 0, kind: input, shape index: {}]
  %s1 = inlined_call_operand.vmem [shape: f32[8,32], index: 1, kind: input, shape index: {}]
  %s2 = inlined_call_operand.vmem [shape: f32[1,8], index: 2, kind: input, shape index: {}]
  %s3 = inlined_call_operand.vmem [shape: f32[32,8], index: 3, kind: input, shape index: {}]
  %s4 = inlined_call_operand.vmem [shape: f32[1,32], index: 4, kind: input, shape index: {}]
  %s5 = inlined_call_operand.vmem [shape: f32[16,8], index: 5, kind: output, shape index: {0}]
  %s6 = inlined_call_operand.hbm [shape: f32[16,32], index: 6, kind: output, shape index: {1}]
  %7 = xla_tuple %s5, %s6
  %s8 = sld [smem:[#allocation0]]
  $region38: #{tpu_custom_call.1} parent=0
    _
  %s10 = ssub.s32 1, %s8
  %s11 = scalar_select 0, %s10, %s8
  $region1: #{tpu_custom_call.1} parent=0
    #allocation2 [shape = 'u8[8192]{0}', space=vmem, size = 0x2000, scoped, tag = 'output window, operand 1, single buffered']
    #allocation3 [shape = 's32[1]{0}', space=sflag, size = 0x4, scoped, tag = 'scoped memory for tpu_custom_call.1']
    %12 = vsyncpa [#allocation3], 0
    // Predicated region
    $region2: #{tpu_custom_call.1} parent=1 // pred_check
      _
    $region3: #{tpu_custom_call.1} parent=1 // pred_check_branch
      %14 = sbr.rel (0) target = $region5
    $region4: #{tpu_custom_call.1} parent=1 // pred_region
      _
    $region5: #{tpu_custom_call.1} parent=1 // pred_fallthru
      _
    // Predicated region
    $region6: #{tpu_custom_call.1} parent=1 // pred_check
      _
    $region7: #{tpu_custom_call.1} parent=1 // pred_check_branch
      %16 = sbr.rel (0) target = $region9
    $region8: #{tpu_custom_call.1} parent=1 // pred_region
      _
    $region9: #{tpu_custom_call.1} parent=1 // pred_fallthru
      _
    // Predicated region
    $region10: #{tpu_custom_call.1} parent=1 // pred_check
      _
    $region11: #{tpu_custom_call.1} parent=1 // pred_check_branch
      %18 = sbr.rel (0) target = $region13
    $region12: #{tpu_custom_call.1} parent=1 // pred_region
      _
    $region13: #{tpu_custom_call.1} parent=1 // pred_fallthru
      _
    // Predicated region
    $region14: #{tpu_custom_call.1} parent=1 // pred_check
      _
    $region15: #{tpu_custom_call.1} parent=1 // pred_check_branch
      %20 = sbr.rel (0) target = $region17
    $region16: #{tpu_custom_call.1} parent=1 // pred_region
      _
    $region17: #{tpu_custom_call.1} parent=1 // pred_fallthru
      _
    // Predicated region
    $region18: #{tpu_custom_call.1} parent=1 // pred_check
      _
    $region19: #{tpu_custom_call.1} parent=1 // pred_check_branch
      %22 = sbr.rel (0) target = $region21
    $region20: #{tpu_custom_call.1} parent=1 // pred_region
      _
    $region21: #{tpu_custom_call.1} parent=1 // pred_fallthru
      _
    %v23 = vld [vmem:[%s0] sm:$0xff]
    %v24 = vld [vmem:[%s0 + $0x8] sm:$0xff]
    %v25 = vld [vmem:[%s1] sm:$0xff]
    %v26 = vld [vmem:[%s2] sm:$0x1]
    %v28 = vlaneseq
    %v29 = vshrl.u32 %v28, 7
    %v30 = vsub.s32 0, %v29
    %v31 = vrot.slane %v26, %v30
    %vm33 = vcmask 261120
    %v35 = vsel %vm33, %v23, 0
    %v38 = vsel %vm33, %v24, 0
    %v41 = vsel %vm33, %v25, 0
    %43 = vmatprep.subr.mxu0 0.0
    %44 = vmatpush1.xpose.msra.mxu0 0.0
    %45 = vmatprep.subr.mxu0 0.0
    %46 = vmatpush1.xpose.msra.mxu0 0.0
    %47 = vmatprep.subr.mxu0 0.0
    %48 = vmatpush1.xpose.msra.mxu0 0.0
    %49 = vmatprep.subr.mxu0 0.0
    %50 = vmatpush1.xpose.msra.mxu0 0.0
    %51 = vmatprep.subr.mxu0 0.0
    %52 = vmatpush1.xpose.msra.mxu0 0.0
    %53 = vmatprep.subr.mxu0 0.0
    %54 = vmatpush1.xpose.msra.mxu0 0.0
    %55 = vmatprep.subr.mxu0 0.0
    %56 = vmatpush1.xpose.msra.mxu0 0.0
    %57 = vmatprep.subr.mxu0 0.0
    %58 = vmatpush1.xpose.msra.mxu0 0.0
    %59 = vmatprep.subr.mxu0 0.0
    %60 = vmatpush1.xpose.msra.mxu0 0.0
    %61 = vmatprep.subr.mxu0 0.0
    %62 = vmatpush1.xpose.msra.mxu0 0.0
    %63 = vmatprep.subr.mxu0 0.0
    %64 = vmatpush1.xpose.msra.mxu0 0.0
    %65 = vmatprep.subr.mxu0 0.0
    %66 = vmatpush1.xpose.msra.mxu0 0.0
    %67 = vmatprep.subr.mxu0 0.0
    %68 = vmatpush1.xpose.msra.mxu0 0.0
    %69 = vmatprep.subr.mxu0 0.0
    %70 = vmatpush1.xpose.msra.mxu0 0.0
    %71 = vmatprep.subr.mxu0 0.0
    %72 = vmatpush1.xpose.msra.mxu0 0.0
    %73 = vmatprep.subr.mxu0 0.0
    %74 = vmatpush1.xpose.msra.mxu0 %v41
    %75 = vmatprep.subr.mxu0 0.0
    %76 = vmatpush2.xpose.msra.mxu0 0.0
    %77 = vmatprep.subr.mxu0 0.0
    %78 = vmatpush2.xpose.msra.mxu0 0.0
    %79 = vmatprep.subr.mxu0 0.0
    %80 = vmatpush2.xpose.msra.mxu0 0.0
    %81 = vmatprep.subr.mxu0 0.0
    %82 = vmatpush2.xpose.msra.mxu0 0.0
    %83 = vmatprep.subr.mxu0 0.0
    %84 = vmatpush2.xpose.msra.mxu0 0.0
    %85 = vmatprep.subr.mxu0 0.0
    %86 = vmatpush2.xpose.msra.mxu0 0.0
    %87 = vmatprep.subr.mxu0 0.0
    %88 = vmatpush2.xpose.msra.mxu0 0.0
    %89 = vmatprep.subr.mxu0 0.0
    %90 = vmatpush2.xpose.msra.mxu0 0.0
    %91 = vmatprep.subr.mxu0 0.0
    %92 = vmatpush2.xpose.msra.mxu0 0.0
    %93 = vmatprep.subr.mxu0 0.0
    %94 = vmatpush2.xpose.msra.mxu0 0.0
    %95 = vmatprep.subr.mxu0 0.0
    %96 = vmatpush2.xpose.msra.mxu0 0.0
    %97 = vmatprep.subr.mxu0 0.0
    %98 = vmatpush2.xpose.msra.mxu0 0.0
    %99 = vmatprep.subr.mxu0 0.0
    %100 = vmatpush2.xpose.msra.mxu0 0.0
    %101 = vmatprep.subr.mxu0 0.0
    %102 = vmatpush2.xpose.msra.mxu0 0.0
    %103 = vmatprep.subr.mxu0 0.0
    %104 = vmatpush2.xpose.msra.mxu0 0.0
    %105 = vmatprep.subr.mxu0 0.0
    %106 = vmatpush2.xpose.msra.mxu0 0.0
    %107 = vmatprep.mubr.f32.mxu0 0.0
    %108 = vmatmul.mubr.f32.gmra.mxu0 %v35
    %v109 = vpop.f32.mrf.mxu0
    %v110 = vadd.f32 %v31, %v109
    %v111 = vpop.f32.mrf.mxu0
    %112 = vmatprep.mubr.f32.mxu0 0.0
    %113 = vmatmul.mubr.f32.gmra.mxu0 %v38
    %v114 = vpop.f32.mrf.mxu0
    %v115 = vadd.f32 %v31, %v114
    %v116 = vpop.f32.mrf.mxu0
    %117 = vdwg.mxu0
    %vm118 = vcmask 64512
    %119 = vst.msk [vmem:[%s5] sm:$0xff] %vm118, %v110
    %120 = vst.msk [vmem:[%s5 + $0x8] sm:$0xff] %vm118, %v115
    %v121 = vld [vmem:[%s3] sm:$0xff]
    %v122 = vld [vmem:[%s3 + $0x8] sm:$0xff]
    %v123 = vld [vmem:[%s3 + $0x10] sm:$0xff]
    %v124 = vld [vmem:[%s3 + $0x18] sm:$0xff]
    %v125 = vld [vmem:[%s4] sm:$0x1]
    %v127 = vlaneseq
    %v128 = vshrl.u32 %v127, 7
    %v129 = vsub.s32 0, %v128
    %v130 = vrot.slane %v125, %v129
    %v133 = vsel %vm118, %v110, 0
    %v136 = vsel %vm118, %v115, 0
    %v139 = vsel %vm118, %v121, 0
    %v142 = vsel %vm118, %v122, 0
    %v145 = vsel %vm118, %v123, 0
    %v148 = vsel %vm118, %v124, 0
    %150 = vmatprep.subr.mxu0 0.0
    %151 = vmatpush1.xpose.msra.mxu0 0.0
    %152 = vmatprep.subr.mxu0 0.0
    %153 = vmatpush1.xpose.msra.mxu0 0.0
    %154 = vmatprep.subr.mxu0 0.0
    %155 = vmatpush1.xpose.msra.mxu0 0.0
    %156 = vmatprep.subr.mxu0 0.0
    %157 = vmatpush1.xpose.msra.mxu0 0.0
    %158 = vmatprep.subr.mxu0 0.0
    %159 = vmatpush1.xpose.msra.mxu0 0.0
    %160 = vmatprep.subr.mxu0 0.0
    %161 = vmatpush1.xpose.msra.mxu0 0.0
    %162 = vmatprep.subr.mxu0 0.0
    %163 = vmatpush1.xpose.msra.mxu0 0.0
    %164 = vmatprep.subr.mxu0 0.0
    %165 = vmatpush1.xpose.msra.mxu0 0.0
    %166 = vmatprep.subr.mxu0 0.0
    %167 = vmatpush1.xpose.msra.mxu0 0.0
    %168 = vmatprep.subr.mxu0 0.0
    %169 = vmatpush1.xpose.msra.mxu0 0.0
    %170 = vmatprep.subr.mxu0 0.0
    %171 = vmatpush1.xpose.msra.mxu0 0.0
    %172 = vmatprep.subr.mxu0 0.0
    %173 = vmatpush1.xpose.msra.mxu0 0.0
    %174 = vmatprep.subr.mxu0 0.0
    %175 = vmatpush1.xpose.msra.mxu0 %v148
    %176 = vmatprep.subr.mxu0 0.0
    %177 = vmatpush1.xpose.msra.mxu0 %v145
    %178 = vmatprep.subr.mxu0 0.0
    %179 = vmatpush1.xpose.msra.mxu0 %v142
    %180 = vmatprep.subr.mxu0 0.0
    %181 = vmatpush1.xpose.msra.mxu0 %v139
    %182 = vmatprep.subr.mxu0 0.0
    %183 = vmatpush2.xpose.msra.mxu0 0.0
    %184 = vmatprep.subr.mxu0 0.0
    %185 = vmatpush2.xpose.msra.mxu0 0.0
    %186 = vmatprep.subr.mxu0 0.0
    %187 = vmatpush2.xpose.msra.mxu0 0.0
    %188 = vmatprep.subr.mxu0 0.0
    %189 = vmatpush2.xpose.msra.mxu0 0.0
    %190 = vmatprep.subr.mxu0 0.0
    %191 = vmatpush2.xpose.msra.mxu0 0.0
    %192 = vmatprep.subr.mxu0 0.0
    %193 = vmatpush2.xpose.msra.mxu0 0.0
    %194 = vmatprep.subr.mxu0 0.0
    %195 = vmatpush2.xpose.msra.mxu0 0.0
    %196 = vmatprep.subr.mxu0 0.0
    %197 = vmatpush2.xpose.msra.mxu0 0.0
    %198 = vmatprep.subr.mxu0 0.0
    %199 = vmatpush2.xpose.msra.mxu0 0.0
    %200 = vmatprep.subr.mxu0 0.0
    %201 = vmatpush2.xpose.msra.mxu0 0.0
    %202 = vmatprep.subr.mxu0 0.0
    %203 = vmatpush2.xpose.msra.mxu0 0.0
    %204 = vmatprep.subr.mxu0 0.0
    %205 = vmatpush2.xpose.msra.mxu0 0.0
    %206 = vmatprep.subr.mxu0 0.0
    %207 = vmatpush2.xpose.msra.mxu0 0.0
    %208 = vmatprep.subr.mxu0 0.0
    %209 = vmatpush2.xpose.msra.mxu0 0.0
    %210 = vmatprep.subr.mxu0 0.0
    %211 = vmatpush2.xpose.msra.mxu0 0.0
    %212 = vmatprep.subr.mxu0 0.0
    %213 = vmatpush2.xpose.msra.mxu0 0.0
    %214 = vmatprep.mubr.f32.mxu0 0.0
    %215 = vmatmul.mubr.f32.gmra.mxu0 %v133
    %v216 = vpop.f32.mrf.mxu0
    %v217 = vadd.f32 %v130, %v216
    %v218 = vpop.f32.mrf.mxu0
    %219 = vmatprep.mubr.f32.mxu0 0.0
    %220 = vmatmul.mubr.f32.gmra.mxu0 %v136
    %v221 = vpop.f32.mrf.mxu0
    %v222 = vadd.f32 %v130, %v221
    %v223 = vpop.f32.mrf.mxu0
    %224 = vdwg.mxu0
    %225 = vst.msk [vmem:[#allocation2] sm:$0xff] %vm33, %v217
    %226 = vst.msk [vmem:[#allocation2 + $0x8] sm:$0xff] %vm33, %v222
    // Predicated region
    $region22: #{tpu_custom_call.1} parent=1 // pred_check
      _
    $region23: #{tpu_custom_call.1} parent=1 // pred_check_branch
      %228 = sbr.rel (0) target = $region25
    $region24: #{tpu_custom_call.1} parent=1 // pred_region
      _
    $region25: #{tpu_custom_call.1} parent=1 // pred_fallthru
      _
    // Predicated region
    $region26: #{tpu_custom_call.1} parent=1 // pred_check
      _
    $region27: #{tpu_custom_call.1} parent=1 // pred_check_branch
      %230 = sbr.rel (0) target = $region29
    $region28: #{tpu_custom_call.1} parent=1 // pred_region
      %s232 = ssub.s32 256, 256
      %233 = vsyncadd [#allocation3], %s232
      %s234 = sshll.u32 [#allocation2], 4
      %s235 = int_to_ptr.vmem [resolvable:$true] %s234
      %240 = dma.vmem_to_hbm [thread:$0]  %s235, 256, %s6, [#allocation3], 128, 128, 8
    $region29: #{tpu_custom_call.1} parent=1 // pred_fallthru
      _
    // Predicated region
    $region30: #{tpu_custom_call.1} parent=1 // pred_check
      _
    $region31: #{tpu_custom_call.1} parent=1 // pred_check_branch
      %242 = sbr.rel (0) target = $region33
    $region32: #{tpu_custom_call.1} parent=1 // pred_region
      _
    $region33: #{tpu_custom_call.1} parent=1 // pred_fallthru
      _
    // Predicated region
    $region34: #{tpu_custom_call.1} parent=1 // pred_check
      _
    $region35: #{tpu_custom_call.1} parent=1 // pred_check_branch
      %244 = sbr.rel (0) target = $region37
    $region36: #{tpu_custom_call.1} parent=1 // pred_region
      %245 = dma.done [#allocation3], 256
    $region37: #{tpu_custom_call.1} parent=1 // pred_fallthru
      _
    %246 = vsyncpa [#allocation3], 1

</llo_original>
